<compile_context>
chip_gen: v5e
topology: v5e:2x2
jax: 0.10.0
libtpu: 0.0.40
codegen_flags: <defaults>
</compile_context>

<pallas_src>
import jax
import jax.numpy as jnp
from jax.experimental import pallas as pl
from jax.experimental.pallas import tpu as pltpu


# ---------------------------------------------------------------------------
# Helpers
# ---------------------------------------------------------------------------

def _round_up(x, m):
    return ((x + m - 1) // m) * m


def _largest_divisor_leq(n, cap):
    cap = max(1, min(n, cap))
    for d in range(cap, 0, -1):
        if n % d == 0:
            return d
    return 1


def _vmem_capacity_bytes():
    """Per-core VMEM capacity (falls back to the most conservative value, v7x's 64 MiB)."""
    try:
        info = pltpu.get_tpu_info()
        cap = getattr(info, "vmem_capacity_bytes", None)
        if cap:
            return int(cap)
    except Exception:
        pass
    return 64 * 1024 * 1024


# ---------------------------------------------------------------------------
# Kernels
# ---------------------------------------------------------------------------

def _stage2_full_kernel(x1_ref, y_ref, o_ref):
    """out[b,i,p] = sum_m x1[b,i,m] * y[b,m,p]  (unrolled VPU broadcast-FMA over tiny m).

    x1_ref: (TB, TI, m)     left factor block (possibly bf16)
    y_ref : (TB, m, TP)     f32 stage-1 slab (VMEM-resident across the I axis)
    o_ref : (TB, TI, TP)    packed output block
    """
    m = x1_ref.shape[-1]
    x1 = x1_ref[...].astype(jnp.float32)
    y = y_ref[...].astype(jnp.float32)
    acc = x1[:, :, 0:1] * y[:, 0:1, :]
    for mm in range(1, m):
        acc = acc + x1[:, :, mm:mm + 1] * y[:, mm:mm + 1, :]
    o_ref[...] = acc.astype(o_ref.dtype)


def _elementwise_pair_kernel(x1_ref, x2_ref, w_ref, o_ref):
    """out[r,M] = sum_{m,n} x1[r,m] * x2[r,n] * w[m,n,M]; outer product formed in VMEM.

    x1_ref: (TR, m), x2_ref: (TR, n), w_ref: (m, n, M_tot), o_ref: (TR, M_tot)
    """
    m = x1_ref.shape[-1]
    x1 = x1_ref[...].astype(jnp.float32)
    x2 = x2_ref[...].astype(jnp.float32)
    acc = jnp.zeros(o_ref.shape, jnp.float32)
    for mm in range(m):
        scaled = x1[:, mm:mm + 1] * x2                               # (TR, n)  VPU
        acc = acc + jnp.dot(scaled, w_ref[mm].astype(jnp.float32),
                            preferred_element_type=jnp.float32)      # (TR, M)  MXU
    o_ref[...] = acc.astype(o_ref.dtype)


# ---------------------------------------------------------------------------
# Pallas wrappers
# ---------------------------------------------------------------------------

def _stage2_full(x1l, y_all, compute_dtype=None):
    """out[b,i,p] = sum_m x1l[b,i,m] * y_all[b,m,p]   (the store-bound hot path).

    x1l:   (B, I, m)   left factor for one l1 (all l2/l3 fused into the packed p axis)
    y_all: (B, m, P)   f32 stage-1 result, P = sum_l2 J_l2 * M_tot_l2
    Returns (B, I, P) in x1l.dtype.
    """
    B, I, m = x1l.shape
    P = y_all.shape[2]
    out_dtype = x1l.dtype
    cdt = compute_dtype if compute_dtype is not None else x1l.dtype
    x1c = x1l.astype(cdt)

    out_isz = jnp.dtype(out_dtype).itemsize
    x1_isz = jnp.dtype(cdt).itemsize
    y_isz = jnp.dtype(y_all.dtype).itemsize

    cap = _vmem_capacity_bytes()
    big_vmem = cap >= 96 * 1024 * 1024                 # v5e / v6e (128 MiB) vs v7x (64 MiB)
    out_budget = (8 if big_vmem else 4) * 1024 * 1024
    col_budget = (8 if big_vmem else 4) * 1024 * 1024

    # Batch tile: a divisor of B -> no padded batch rows (padded rows waste store BW).
    TB = _largest_divisor_leq(B, 8)

    # bf16 operands want sublane-pack friendly (multiple-of-16) row tiles.
    row_align = 16 if x1_isz < 4 else 8

    # Column tiling of the packed p axis, only when the resident Y / out blocks get large.
    tp_cap_y = col_budget // max(1, TB * m * y_isz)
    tp_cap_o = out_budget // max(1, TB * row_align * out_isz)
    tp_cap = max(128, (min(tp_cap_y, tp_cap_o) // 128) * 128)
    if P > tp_cap:
        tp = tp_cap
        P_pad = _round_up(P, tp)
    else:
        tp, P_pad = P, P
    np_ = P_pad // tp

    # Channel-row tile sized from the per-generation output-block budget.
    ti = out_budget // max(1, TB * tp * out_isz)
    ti = max(row_align, (ti // row_align) * row_align)
    ti = min(ti, _round_up(I, row_align))
    I_pad = _round_up(I, ti)

    nb, ni = B // TB, I_pad // ti
    # v7x has 2 TensorCores: make sure at least 2 blocks exist on a parallel axis.
    if nb * ni * np_ < 2:
        if ti >= 2 * row_align:
            ti = max(row_align, ((ti // 2) // row_align) * row_align)
            I_pad = _round_up(I, ti)
            ni = I_pad // ti
        elif B >= 2:
            TB = _largest_divisor_leq(B, B // 2)
            nb = B // TB

    x1p = jnp.pad(x1c, ((0, 0), (0, I_pad - I), (0, 0))) if I_pad != I else x1c
    yp = jnp.pad(y_all, ((0, 0), (0, 0), (0, P_pad - P))) if P_pad != P else y_all

    x1_blk = TB * ti * m * x1_isz
    y_blk = TB * m * tp * y_isz
    o_blk = TB * ti * tp * out_isz
    vmem_need = 2 * (x1_blk + y_blk + o_blk) + (8 << 20)        # double-buffered + headroom
    vmem_limit = int(min(max(vmem_need, 32 << 20), max(int(cap * 0.9), 32 << 20)))

    flops = 2 * B * I_pad * P_pad * m
    bytes_accessed = (B * I_pad * m * x1_isz + B * m * P_pad * y_isz
                      + B * I_pad * P_pad * out_isz)

    # Grid order (batch, p-tile, i-tile): the Y block index is constant across the
    # innermost i axis, so Y stays VMEM-resident while output tiles stream out.
    res = pl.pallas_call(
        _stage2_full_kernel,
        out_shape=jax.ShapeDtypeStruct((B, I_pad, P_pad), out_dtype),
        grid=(nb, np_, ni),
        in_specs=[
            pl.BlockSpec((TB, ti, m), lambda bt, pt, it: (bt, it, 0)),
            pl.BlockSpec((TB, m, tp), lambda bt, pt, it: (bt, 0, pt)),
        ],
        out_specs=pl.BlockSpec((TB, ti, tp), lambda bt, pt, it: (bt, it, pt)),
        compiler_params=pltpu.CompilerParams(
            dimension_semantics=("parallel", "parallel", "parallel"),
            vmem_limit_bytes=vmem_limit),
        cost_estimate=pl.CostEstimate(flops=int(flops), transcendentals=0,
                                      bytes_accessed=int(bytes_accessed)),
    )(x1p, yp)

    return res[:, :I, :P]


def _tp_pair_elementwise(x1l, x2l, w_cat, compute_dtype=None):
    """out[b,i,M] = sum_{m,n} w_cat[m,n,M] * x1l[b,i,m] * x2l[b,i,n]  -> (B, I, M_tot).

    The x1(x)x2 outer product is formed inside the kernel (never written to HBM).
    """
    B, I, m = x1l.shape
    _, J, n = x2l.shape
    assert I == J, "channel_rule='elementwise' requires equal multiplicities"
    M_tot = w_cat.shape[2]
    out_dtype = x1l.dtype
    cdt = compute_dtype if compute_dtype is not None else x1l.dtype
    c_isz = jnp.dtype(cdt).itemsize
    out_isz = jnp.dtype(out_dtype).itemsize

    R = B * I
    x1f = x1l.reshape(R, m).astype(cdt)
    x2f = x2l.reshape(R, n).astype(cdt)
    w = w_cat.astype(jnp.float32)

    row_align = 16 if c_isz < 4 else 8
    max_rows = 4096
    nr = max(1, -(-R // max_rows))
    if nr == 1 and R > row_align:
        nr = 2                                  # >= 2 blocks for v7x's two TensorCores
    tr = _round_up(-(-R // nr), row_align)
    R_pad = tr * nr
    if R_pad != R:
        x1f = jnp.pad(x1f, ((0, R_pad - R), (0, 0)))
        x2f = jnp.pad(x2f, ((0, R_pad - R), (0, 0)))

    cap = _vmem_capacity_bytes()
    vmem_need = (2 * (tr * (m + n) * c_isz + tr * M_tot * out_isz)
                 + 2 * m * n * M_tot * 4 + (8 << 20))
    vmem_limit = int(min(max(vmem_need, 32 << 20), max(int(cap * 0.9), 32 << 20)))

    flops = 2 * R_pad * m * n * M_tot
    bytes_accessed = R_pad * (m + n) * c_isz + m * n * M_tot * 4 + R_pad * M_tot * out_isz

    out = pl.pallas_call(
        _elementwise_pair_kernel,
        out_shape=jax.ShapeDtypeStruct((R_pad, M_tot), out_dtype),
        grid=(nr,),
        in_specs=[
            pl.BlockSpec((tr, m), lambda r: (r, 0)),
            pl.BlockSpec((tr, n), lambda r: (r, 0)),
            pl.BlockSpec((m, n, M_tot), lambda r: (0, 0, 0)),
        ],
        out_specs=pl.BlockSpec((tr, M_tot), lambda r: (r, 0)),
        compiler_params=pltpu.CompilerParams(
            dimension_semantics=("parallel",),
            vmem_limit_bytes=vmem_limit),
        cost_estimate=pl.CostEstimate(flops=int(flops), transcendentals=0,
                                      bytes_accessed=int(bytes_accessed)),
    )(x1f, x2f, w)

    return out[:R].reshape(B, I, M_tot)


# ---------------------------------------------------------------------------
# Module
# ---------------------------------------------------------------------------

class SO3TensorProduct:
    """JAX/Pallas port of so3_tensor_product (ls_rule in {'full','elementwise'}).

    irreps_in: list of (mul, l) tuples (all parity +1); w3j_matrices: dict {(l1,l2,l3): array}.
    compute_dtype: optional operand dtype for the stage-2 kernel (e.g. jnp.bfloat16);
    Y and the accumulation stay in f32, the output keeps the input dtype.
    """

    def __init__(self, irreps_in, w3j_matrices, filter_ir_out=None,
                 ls_rule='full', channel_rule='full', compute_dtype=None):
        assert ls_rule in ('full', 'elementwise', 'efficient')
        assert channel_rule in ('full', 'elementwise')
        if ls_rule == 'efficient':
            # TODO(synk): ls_rule='efficient' requires get_efficient_connections (not provided).
            raise NotImplementedError("ls_rule='efficient' not implemented")
        self.irreps_in = list(irreps_in)
        self.w3j = w3j_matrices
        self.ls_rule = ls_rule
        self.channel_rule = channel_rule
        self.compute_dtype = compute_dtype
        self.ls = sorted(set(l for _, l in irreps_in))
        out = []
        for mul1, l1 in irreps_in:
            for mul2, l2 in irreps_in:
                if ls_rule == 'elementwise' and l1 != l2:
                    continue
                if channel_rule == 'elementwise':
                    assert mul1 == mul2
                for l3 in range(abs(l1 - l2), l1 + l2 + 1):
                    if filter_ir_out is not None and l3 not in filter_ir_out:
                        continue
                    out.append((mul1 * mul2 if channel_rule == 'full' else mul1, l3))
        self.ls_out = sorted(set(l for _, l in out))
        self.set_ls_out = set(self.ls_out)

    def __call__(self, x1, x2):
        output = {l3: [] for l3 in self.ls_out}
        for l1 in self.ls:
            # Surviving (l2, l3-list) segments for this l1.
            segs = []
            for l2 in self.ls:
                if self.ls_rule == 'elementwise' and l1 != l2:
                    continue
                output_ls = [l for l in range(abs(l1 - l2), l1 + l2 + 1)
                             if l in self.set_ls_out]
                if output_ls:
                    segs.append((l2, output_ls))
            if not segs:
                continue

            if self.channel_rule == 'full':
                # Stage 1 (small, XLA, f32): Y_l2[b,m,(j,M)] = sum_n w3j[m,n,M] * x2[b,j,n],
                # concatenated over l2 into one lane-dense packed slab.
                x1l = x1[l1]
                B, I, m = x1l.shape
                ys, col_info, off = [], [], 0
                for l2, output_ls in segs:
                    w_cat = jnp.concatenate(
                        [self.w3j[(l1, l2, l3)] for l3 in output_ls], axis=2)
                    x2l = x2[l2]
                    J, Mt = x2l.shape[1], w_cat.shape[2]
                    y = jnp.einsum('bjn,mnM->bmjM',
                                   x2l.astype(jnp.float32), w_cat.astype(jnp.float32),
                                   preferred_element_type=jnp.float32)
                    ys.append(y.reshape(B, m, J * Mt))
                    col_info.append((output_ls, J, Mt, off))
                    off += J * Mt
                y_all = jnp.concatenate(ys, axis=2) if len(ys) > 1 else ys[0]

                # Stage 2 (output-sized, Pallas): one fused call per l1.
                res = _stage2_full(x1l, y_all, self.compute_dtype)

                for output_ls, J, Mt, off in col_info:
                    seg = res[:, :, off:off + J * Mt].reshape(B, I, J, Mt)
                    moff = 0
                    for l3 in output_ls:
                        M = 2 * l3 + 1
                        output[l3].append(
                            seg[:, :, :, moff:moff + M].reshape(B, I * J, M))
                        moff += M
            else:  # channel_rule == 'elementwise'
                # TODO(synk): fuse all (l1,l2) pairs into one call with block-diagonal W
                # (widens the packed output) when all multiplicities match.
                for l2, output_ls in segs:
                    w_cat = jnp.concatenate(
                        [self.w3j[(l1, l2, l3)] for l3 in output_ls], axis=2)
                    res = _tp_pair_elementwise(x1[l1], x2[l2], w_cat, self.compute_dtype)
                    moff = 0
                    for l3 in output_ls:
                        M = 2 * l3 + 1
                        output[l3].append(res[:, :, moff:moff + M])
                        moff += M

        # Final per-l3 channel concatenation (same layout/order as the PyTorch reference).
        return {l3: jnp.concatenate(output[l3], axis=1) for l3 in self.ls_out}


# ---------------------------------------------------------------------------
# Pure-jnp reference (mirror of the PyTorch forward) for correctness checking
# ---------------------------------------------------------------------------

def _reference(tp, x1, x2):
    output = {l3: [] for l3 in tp.ls_out}
    for l1 in tp.ls:
        for l2 in tp.ls:
            if tp.ls_rule == 'elementwise' and l1 != l2:
                continue
            output_ls = [l for l in range(abs(l1 - l2), l1 + l2 + 1) if l in tp.set_ls_out]
            if not output_ls:
                continue
            if tp.channel_rule == 'full':
                op = jnp.einsum('bim,bjn->bijmn', x1[l1], x2[l2])
                s = op.shape
                op = op.reshape(s[0], s[1] * s[2], s[3], s[4])
            else:
                op = jnp.einsum('bim,bin->bimn', x1[l1], x2[l2])
            for l3 in output_ls:
                output[l3].append(jnp.einsum('mnM,bimn->biM', tp.w3j[(l1, l2, l3)], op))
    return {l3: jnp.concatenate(output[l3], axis=1) for l3 in tp.ls_out}


# ---------------------------------------------------------------------------
# Demo / self-test
# ---------------------------------------------------------------------------

def _make_problem(key, irreps_in, filter_ir_out, B):
    ls = sorted(set(l for _, l in irreps_in))
    w3j = {}
    for l1 in ls:
        for l2 in ls:
            for l3 in range(abs(l1 - l2), l1 + l2 + 1):
                if l3 not in filter_ir_out:
                    continue
                key, sub = jax.random.split(key)
                w3j[(l1, l2, l3)] = jax.random.normal(
                    sub, (2 * l1 + 1, 2 * l2 + 1, 2 * l3 + 1), jnp.float32)
    x1, x2 = {}, {}
    for mul, l in irreps_in:
        key, s1, s2 = jax.random.split(key, 3)
        x1[l] = jax.random.normal(s1, (B, mul, 2 * l + 1), jnp.float32)
        x2[l] = jax.random.normal(s2, (B, mul, 2 * l + 1), jnp.float32)
    return key, w3j, x1, x2


if __name__ == "__main__":
    key = jax.random.PRNGKey(0)

    # --- config 1: 4x0e + 4x1e, B=2 ---
    irreps_a = [(4, 0), (4, 1)]
    filt = [0, 1, 2]
    key, w3j_a, x1_a, x2_a = _make_problem(key, irreps_a, filt, B=2)

    # channel_rule='full', f32
    tp = SO3TensorProduct(irreps_a, w3j_a, filter_ir_out=filt,
                          ls_rule='full', channel_rule='full')
    out = tp(x1_a, x2_a)
    out = jax.tree_util.tree_map(jax.block_until_ready, out)
    ref = _reference(tp, x1_a, x2_a)
    for l3 in tp.ls_out:
        assert out[l3].shape == ref[l3].shape, (l3, out[l3].shape, ref[l3].shape)
        assert jnp.allclose(out[l3], ref[l3], atol=2e-3, rtol=2e-3), f"mismatch at l={l3}"

    # channel_rule='elementwise', f32
    tp_e = SO3TensorProduct(irreps_a, w3j_a, filter_ir_out=filt,
                            ls_rule='full', channel_rule='elementwise')
    out_e = tp_e(x1_a, x2_a)
    out_e = jax.tree_util.tree_map(jax.block_until_ready, out_e)
    ref_e = _reference(tp_e, x1_a, x2_a)
    for l3 in tp_e.ls_out:
        assert out_e[l3].shape == ref_e[l3].shape
        assert jnp.allclose(out_e[l3], ref_e[l3], atol=2e-3, rtol=2e-3), f"mismatch (ew) l={l3}"

    # bf16 operand path (x1 only; Y and accumulation stay f32), loose relative check
    tp_bf = SO3TensorProduct(irreps_a, w3j_a, filter_ir_out=filt,
                             ls_rule='full', channel_rule='full',
                             compute_dtype=jnp.bfloat16)
    out_bf = tp_bf(x1_a, x2_a)
    out_bf = jax.tree_util.tree_map(jax.block_until_ready, out_bf)
    for l3 in tp.ls_out:
        num = jnp.linalg.norm(out_bf[l3].astype(jnp.float32) - ref[l3])
        den = jnp.linalg.norm(ref[l3]) + 1e-6
        assert float(num / den) < 3e-2, f"bf16 path too far off at l={l3}"

    # --- config 2: uneven multiplicities, 3 l's, B=3 (exercises fused-l2 path + padding) ---
    irreps_b = [(5, 0), (3, 1), (2, 2)]
    key, w3j_b, x1_b, x2_b = _make_problem(key, irreps_b, filt, B=3)
    tp_b = SO3TensorProduct(irreps_b, w3j_b, filter_ir_out=filt,
                            ls_rule='full', channel_rule='full')
    out_b = tp_b(x1_b, x2_b)
    out_b = jax.tree_util.tree_map(jax.block_until_ready, out_b)
    ref_b = _reference(tp_b, x1_b, x2_b)
    for l3 in tp_b.ls_out:
        assert out_b[l3].shape == ref_b[l3].shape, (l3, out_b[l3].shape, ref_b[l3].shape)
        assert jnp.allclose(out_b[l3], ref_b[l3], atol=2e-3, rtol=2e-3), f"mismatch (cfg2) l={l3}"

    print("KERNEL_OK")
</pallas_src>

<mosaic_0001>
module attributes {stable_mosaic.version = 11 : i64} {
  func.func @_stage2_full_kernel(%arg0: i32, %arg1: i32, %arg2: i32, %arg3: memref<1x8x1xf32, #tpu.memory_space<vmem>>, %arg4: memref<1x1x16xf32, #tpu.memory_space<vmem>>, %arg5: memref<1x8x16xf32, #tpu.memory_space<vmem>>) attributes {dimension_semantics = [#tpu.dimension_semantics<parallel>, #tpu.dimension_semantics<parallel>, #tpu.dimension_semantics<parallel>], iteration_bounds = array<i64: 2, 1, 1>, scalar_prefetch = 0 : i64, scratch_operands = 0 : i64, tpu.core_type = #tpu.core_type<tc>, window_params = [{transform_indices = @transform_0, window_bounds = array<i64: 1, 8, 1>}, {transform_indices = @transform_1, window_bounds = array<i64: 1, 1, 16>}, {transform_indices = @transform_2, window_bounds = array<i64: 1, 8, 16>}]} {
    %c0 = arith.constant 0 : index
    %c0_0 = arith.constant 0 : index
    %c0_1 = arith.constant 0 : index
    %0 = vector.load %arg3[%c0, %c0_0, %c0_1] : memref<1x8x1xf32, #tpu.memory_space<vmem>>, vector<1x8x1xf32>
    %c0_2 = arith.constant 0 : index
    %c0_3 = arith.constant 0 : index
    %c0_4 = arith.constant 0 : index
    %1 = vector.load %arg4[%c0_2, %c0_3, %c0_4] : memref<1x1x16xf32, #tpu.memory_space<vmem>>, vector<1x1x16xf32>
    %2 = vector.broadcast %0 : vector<1x8x1xf32> to vector<1x8x16xf32>
    %3 = vector.broadcast %1 : vector<1x1x16xf32> to vector<1x8x16xf32>
    %4 = arith.mulf %2, %3 : vector<1x8x16xf32>
    %c0_5 = arith.constant 0 : index
    %c0_6 = arith.constant 0 : index
    %c0_7 = arith.constant 0 : index
    %5 = vector.load %arg5[%c0_5, %c0_6, %c0_7] : memref<1x8x16xf32, #tpu.memory_space<vmem>>, vector<1x8x16xf32>
    tpu.vector_store %arg5[%c0_5, %c0_6, %c0_7], %4 {strides = array<i32>} : memref<1x8x16xf32, #tpu.memory_space<vmem>>, vector<1x8x16xf32>,
    return
  }
  func.func @transform_0(%arg0: i32, %arg1: i32, %arg2: i32) -> (i32, i32, i32) {
    %c0_i32 = arith.constant 0 : i32
    %c0_i32_0 = arith.constant 0 : i32
    return %arg0, %arg2, %c0_i32 : i32, i32, i32
  }
  func.func @transform_1(%arg0: i32, %arg1: i32, %arg2: i32) -> (i32, i32, i32) {
    %c0_i32 = arith.constant 0 : i32
    %c0_i32_0 = arith.constant 0 : i32
    return %arg0, %c0_i32, %arg1 : i32, i32, i32
  }
  func.func @transform_2(%arg0: i32, %arg1: i32, %arg2: i32) -> (i32, i32, i32) {
    %c0_i32 = arith.constant 0 : i32
    return %arg0, %arg2, %arg1 : i32, i32, i32
  }
}

</mosaic_0001>

<llo_original>
// kernel: tpu_custom_call.1
$region0: #{tpu_custom_call.1}
  #allocation0 [shape = 'u32[]', space=smem, size = 0x4, offset = 0x4, fixed_abs, tag = 'smem constant byte address 0x4 - core index']
  #allocation1 [shape = 'u32[72,128]{1,0:T(1,128)}', space=vmem, size = 0x9000, scoped, tag = 'internal scratch']
  %s0 = inlined_call_operand.vmem [shape: f32[2,8,1], index: 0, kind: input, shape index: {}]
  %s1 = inlined_call_operand.vmem [shape: f32[2,1,16], index: 1, kind: input, shape index: {}]
  %s2 = inlined_call_operand.hbm [shape: f32[2,8,16], index: 2, kind: output, shape index: {}]
  %s3 = sld [smem:[#allocation0]]
  $region41: #{tpu_custom_call.1} parent=0
    _
  %s5 = ssub.s32 1, %s3
  %s6 = scalar_select 0, %s5, %s3
  $region1: #{tpu_custom_call.1} parent=0
    #allocation2 [shape = 'u8[8192]{0}', space=vmem, size = 0x2000, scoped, tag = 'output window, operand 0']
    #allocation3 [shape = 's32[2]{0}', space=sflag, size = 0x8, scoped, tag = 'scoped memory for tpu_custom_call.1']
    %7 = vsyncpa [#allocation3], 0
    %s8 = scalar_lea.sflag [#allocation3], 1
    %9 = vsyncpa %s8, 0
    loop: start=0, step=1, limit=4
    $region2: #{tpu_custom_call.1} parent=1 // loop_pre_header
      _
    $region3: #{tpu_custom_call.1} parent=1 // loop_header
      %s11 = sphi 0, %s15
      %p12 = scmp.ge.s32.totalorder %s11, 4
      %s18 = sphi 0, %s37
      %s19 = sphi 0, %s33
      %s20 = sphi 0, %s29
      %s21 = sphi 0, %s18
      %s22 = sphi 0, %s19
      %s23 = sphi 0, %s20
      %s24 = sphi 0, %s21
      %s25 = sphi 0, %s22
      %s26 = sphi 0, %s23
      %s42 = sphi 0, %s44
      %s45 = sphi 0, %s42
      %s46 = sphi 0, %s45
      %s62 = sphi 0, %s46
      %s70 = sphi 0, %s72
      %s73 = sphi 0, %s70
      %s74 = sphi 0, %s73
      %s90 = sphi 0, %s74
      %s100 = sphi 0, %s102
      %s103 = sphi 0, %s100
      %s104 = sphi 0, %s103
      %s120 = sphi 0, %s104
    $region4: #{tpu_custom_call.1} parent=1 // loop_header_branch
      %14 = sbr.rel (%p12) target = $region8
    $region5: #{tpu_custom_call.1} parent=1 // loop_body
      %s16 = ssub.s32 %s11, 1
      %s17 = ssub.s32 %s11, 2
      %s27 = sadd.s32 1, %s20
      %p28 = scmp.ge.s32.totalorder %s27, 1
      %s29 = scalar_select %p28, 0, %s27
      %s30 = sadd.s32 1, %s19
      %s31 = scalar_select %p28, %s30, %s19
      %p32 = scmp.ge.s32.totalorder %s31, 1
      %s33 = scalar_select %p32, 0, %s31
      %s34 = sadd.s32 1, %s18
      %s35 = scalar_select %p32, %s34, %s18
      %p36 = scmp.ge.s32.totalorder %s35, 2
      %s37 = scalar_select %p36, 0, %s35
      %s38 = ssub.s32 %s18, %s37
      %s39 = ssub.s32 %s20, %s29
      %s40 = sor.u32 %s38, %s39
      %p41 = scmp.eq.s32.totalorder %s40, 0
      %s43 = sadd.s32 %s42, 1
      %s44 = scalar_select %p41, %s42, %s43
      %p47 = pneg %p41
      %p48 = scmp.eq.s32.totalorder %s11, 1
      %p49 = por %p47, %p48
      %p50 = scmp.ne.s32.totalorder %s42, %s45
      %p51 = scmp.eq.s32.totalorder %s11, 0
      %p52 = por %p50, %p51
      %p53 = scmp.ne.s32.totalorder %s42, %s45
      %p54 = scmp.eq.s32.totalorder %s16, 1
      %p55 = por %p53, %p54
      %p56 = scmp.ne.s32.totalorder %s45, %s46
      %p57 = scmp.eq.s32.totalorder %s16, 0
      %p58 = por %p56, %p57
      %p59 = scmp.ne.s32.totalorder %s45, %s46
      %p60 = scmp.eq.s32.totalorder %s17, 1
      %p61 = por %p59, %p60
      %p63 = scmp.ne.s32.totalorder %s46, %s62
      %p64 = scmp.eq.s32.totalorder %s17, 0
      %p65 = por %p63, %p64
      %s66 = ssub.s32 %s18, %s37
      %s67 = ssub.s32 %s19, %s33
      %s68 = sor.u32 %s66, %s67
      %p69 = scmp.eq.s32.totalorder %s68, 0
      %s71 = sadd.s32 %s70, 1
      %s72 = scalar_select %p69, %s70, %s71
      %p75 = pneg %p69
      %p76 = scmp.eq.s32.totalorder %s11, 1
      %p77 = por %p75, %p76
      %p78 = scmp.ne.s32.totalorder %s70, %s73
      %p79 = scmp.eq.s32.totalorder %s11, 0
      %p80 = por %p78, %p79
      %p81 = scmp.ne.s32.totalorder %s70, %s73
      %p82 = scmp.eq.s32.totalorder %s16, 1
      %p83 = por %p81, %p82
      %p84 = scmp.ne.s32.totalorder %s73, %s74
      %p85 = scmp.eq.s32.totalorder %s16, 0
      %p86 = por %p84, %p85
      %p87 = scmp.ne.s32.totalorder %s73, %s74
      %p88 = scmp.eq.s32.totalorder %s17, 1
      %p89 = por %p87, %p88
      %p91 = scmp.ne.s32.totalorder %s74, %s90
      %p92 = scmp.eq.s32.totalorder %s17, 0
      %p93 = por %p91, %p92
      %s94 = ssub.s32 %s18, %s37
      %s95 = ssub.s32 %s20, %s29
      %s96 = sor.u32 %s94, %s95
      %s97 = ssub.s32 %s19, %s33
      %s98 = sor.u32 %s96, %s97
      %p99 = scmp.eq.s32.totalorder %s98, 0
      %s101 = sadd.s32 %s100, 1
      %s102 = scalar_select %p99, %s100, %s101
      %p105 = pneg %p99
      %p106 = scmp.eq.s32.totalorder %s11, 1
      %p107 = por %p105, %p106
      %p108 = scmp.ne.s32.totalorder %s100, %s103
      %p109 = scmp.eq.s32.totalorder %s11, 0
      %p110 = por %p108, %p109
      %p111 = scmp.ne.s32.totalorder %s100, %s103
      %p112 = scmp.eq.s32.totalorder %s16, 1
      %p113 = por %p111, %p112
      %p114 = scmp.ne.s32.totalorder %s103, %s104
      %p115 = scmp.eq.s32.totalorder %s16, 0
      %p116 = por %p114, %p115
      %p117 = scmp.ne.s32.totalorder %s103, %s104
      %p118 = scmp.eq.s32.totalorder %s17, 1
      %p119 = por %p117, %p118
      %p121 = scmp.ne.s32.totalorder %s104, %s120
      %p122 = scmp.eq.s32.totalorder %s17, 0
      %p123 = por %p121, %p122
      %p124 = scmp.le.s32.totalorder 1, %s11
      %p125 = scmp.lt.s32.totalorder %s11, 3
      %p126 = pnand %p124, %p125
      %p127 = pneg %p126
      // Predicated region
      $region9: #{tpu_custom_call.1} parent=5 // pred_check
        _
      $region10: #{tpu_custom_call.1} parent=5 // pred_check_branch
        %129 = sbr.rel (%p126) target = $region12
      $region11: #{tpu_custom_call.1} parent=5 // pred_region
        %s130 = ssub.s32 %s11, 1
      $region12: #{tpu_custom_call.1} parent=5 // pred_fallthru
        _
      %p131 = scmp.lt.s32.totalorder %s11, 2
      // Predicated region
      $region13: #{tpu_custom_call.1} parent=5 // pred_check
        %p132 = pneg %p131
      $region14: #{tpu_custom_call.1} parent=5 // pred_check_branch
        %134 = sbr.rel (%p132) target = $region16
      $region15: #{tpu_custom_call.1} parent=5 // pred_region
        // Predicated region
        $region17: #{tpu_custom_call.1} parent=15 // pred_check
          %p135 = pneg %p52
        $region18: #{tpu_custom_call.1} parent=15 // pred_check_branch
          %137 = sbr.rel (%p135) target = $region20
        $region19: #{tpu_custom_call.1} parent=15 // pred_region
          %p138 = scmp.lt.s32.totalorder %s18, 1
          %s139 = scalar_select %p138, %s18, 1
          %p140 = scmp.lt.s32.totalorder %s20, 0
          %s141 = scalar_select %p140, %s20, 0
          %s142 = sadd.s32 %s141, %s139
          %s143 = smul.addr %s142, 8
          %s144 = scalar_lea.vmem %s0, %s143
        $region20: #{tpu_custom_call.1} parent=15 // pred_fallthru
          _
        // Predicated region
        $region21: #{tpu_custom_call.1} parent=15 // pred_check
          %p145 = pneg %p80
        $region22: #{tpu_custom_call.1} parent=15 // pred_check_branch
          %147 = sbr.rel (%p145) target = $region24
        $region23: #{tpu_custom_call.1} parent=15 // pred_region
          %p148 = scmp.lt.s32.totalorder %s18, 1
          %s149 = scalar_select %p148, %s18, 1
          %p150 = scmp.lt.s32.totalorder %s19, 0
          %s151 = scalar_select %p150, %s19, 0
          %s152 = sadd.s32 %s151, %s149
          %s153 = scalar_lea.vmem %s1, %s152
        $region24: #{tpu_custom_call.1} parent=15 // pred_fallthru
          _
      $region16: #{tpu_custom_call.1} parent=5 // pred_fallthru
        _
      %p154 = scmp.le.s32.totalorder 1, %s11
      %p155 = scmp.lt.s32.totalorder %s11, 3
      %p156 = pnand %p154, %p155
      %p157 = pneg %p156
      // Predicated region
      $region25: #{tpu_custom_call.1} parent=5 // pred_check
        _
      $region26: #{tpu_custom_call.1} parent=5 // pred_check_branch
        %159 = sbr.rel (%p156) target = $region28
      $region27: #{tpu_custom_call.1} parent=5 // pred_region
        %s160 = ssub.s32 %s11, 1
        %p161 = scmp.lt.s32.totalorder %s21, 1
        %s162 = scalar_select %p161, %s21, 1
        %p163 = scmp.lt.s32.totalorder %s23, 0
        %s164 = scalar_select %p163, %s23, 0
        %s165 = sadd.s32 %s164, %s162
        %s166 = smul.addr %s165, 8
        %s167 = scalar_lea.vmem %s0, %s166
        %p168 = pneg %p58
        %p169 = pneg %p55
        %p170 = scmp.lt.s32.totalorder %s21, 1
        %s171 = scalar_select %p170, %s21, 1
        %p172 = scmp.lt.s32.totalorder %s22, 0
        %s173 = scalar_select %p172, %s22, 0
        %s174 = sadd.s32 %s173, %s171
        %s175 = scalar_lea.vmem %s1, %s174
        %p176 = pneg %p86
        %p177 = pneg %p83
        %p178 = pneg %p116
        %p179 = pneg %p113
        %s180 = sand.u32 %s103, 1
        %s181 = scalar_lea.sflag [#allocation3], %s180
        %s182 = sand.u32 %s103, 1
        %s183 = smul.addr %s182, 8
        %s184 = scalar_lea.vmem [#allocation2], %s183
        %p185 = scmp.lt.s32.totalorder %s21, 1
        %s186 = scalar_select %p185, %s21, 1
        %p187 = scmp.lt.s32.totalorder %s23, 0
        %s188 = scalar_select %p187, %s23, 0
        %s189 = sadd.s32 %s188, %s186
        %s190 = smul.addr %s189, 8
        %s191 = scalar_lea.vmem %s0, %s190
        %p192 = scmp.lt.s32.totalorder %s21, 1
        %s193 = scalar_select %p192, %s21, 1
        %p194 = scmp.lt.s32.totalorder %s22, 0
        %s195 = scalar_select %p194, %s22, 0
        %s196 = sadd.s32 %s195, %s193
        %s197 = scalar_lea.vmem %s1, %s196
        %v198 = vld [vmem:[%s191] sm:$0xff]
        %v199 = vld [vmem:[%s197] sm:$0x1]
        %201 = vset.pattern.permute.xlu0 0
        %202 = vperm.xlu0 %201, %v198
        %v203 = vpop.permute.xlu0 %202
        %v206 = vperm.slane %v199, 0
        %v208 = vmul.f32 %v203, %v206
        %vm209 = vcmask 130048
        %210 = vst.msk [vmem:[%s184] sm:$0xff] %vm209, %v208
        %s211 = sand.u32 %s103, 1
        %s212 = scalar_lea.sflag [#allocation3], %s211
        %s213 = sand.u32 %s103, 1
        %s214 = smul.addr %s213, 8
        %s215 = scalar_lea.vmem [#allocation2], %s214
        // Predicated region
        $region29: #{tpu_custom_call.1} parent=27 // pred_check
          %p216 = pneg %p113
        $region30: #{tpu_custom_call.1} parent=27 // pred_check_branch
          %218 = sbr.rel (%p216) target = $region32
        $region31: #{tpu_custom_call.1} parent=27 // pred_region
          %220 = vsyncadd %s212, 0
          %s221 = sadd.s32 %s22, %s23
          %s222 = sadd.s32 %s221, %s21
          %s223 = smul.addr %s222, 8
          %s224 = scalar_lea.hbm %s2, %s223
          %s226 = sshll.u32 %s215, 4
          %s227 = int_to_ptr.vmem [resolvable:$true] %s226
          %s228 = sshll.u32 %s224, 4
          %s229 = int_to_ptr.hbm [resolvable:$true] %s228
          %231 = dma.vmem_to_hbm [thread:$0]  %s227, 128, %s229, %s212
        $region32: #{tpu_custom_call.1} parent=27 // pred_fallthru
          _
      $region28: #{tpu_custom_call.1} parent=5 // pred_fallthru
        _
      %p232 = scmp.le.s32.totalorder 2, %s11
      // Predicated region
      $region33: #{tpu_custom_call.1} parent=5 // pred_check
        %p233 = pneg %p232
      $region34: #{tpu_custom_call.1} parent=5 // pred_check_branch
        %235 = sbr.rel (%p233) target = $region36
      $region35: #{tpu_custom_call.1} parent=5 // pred_region
        %s236 = ssub.s32 %s11, 2
        // Predicated region
        $region37: #{tpu_custom_call.1} parent=35 // pred_check
          %p237 = pneg %p119
        $region38: #{tpu_custom_call.1} parent=35 // pred_check_branch
          %239 = sbr.rel (%p237) target = $region40
        $region39: #{tpu_custom_call.1} parent=35 // pred_region
          %s240 = sand.u32 %s104, 1
          %s241 = scalar_lea.sflag [#allocation3], %s240
          %s242 = sand.u32 %s104, 1
          %s243 = smul.addr %s242, 8
          %s244 = scalar_lea.vmem [#allocation2], %s243
          %246 = dma.done %s241, 128
        $region40: #{tpu_custom_call.1} parent=35 // pred_fallthru
          _
      $region36: #{tpu_custom_call.1} parent=5 // pred_fallthru
        _
    $region6: #{tpu_custom_call.1} parent=1 // loop_footer
      %s15 = sadd.s32 1, %s11
    $region7: #{tpu_custom_call.1} parent=1 // loop_footer_branch
      %10 = sbr.rel target = $region3
    $region8: #{tpu_custom_call.1} parent=1 // loop_exit
      _
    %247 = vsyncpa [#allocation3], 1
    %s248 = scalar_lea.sflag [#allocation3], 1
    %249 = vsyncpa %s248, 1

</llo_original>
